<compile_context>
chip_gen: v7x
topology: tpu7x:2x2x1
jax: 0.10.0
libtpu: 0.0.40
codegen_flags: <defaults>
</compile_context>

<pallas_src>
import jax
import jax.numpy as jnp
import numpy as np
from jax.experimental import pallas as pl
from jax.experimental.pallas import tpu as pltpu


def _classifier_kernel(s_ref, x_ref, w_ref, b_ref, o_ref):
    # s_ref: SMEM (1,) f32 = [thresh]
    # x_ref: (TB, 784) native float dtype     w_ref: (784, 10)
    # b_ref: (10, 1) f32                      o_ref: (10, TB) uint8
    thresh = s_ref[0]

    x = x_ref[...]
    if x.dtype not in (jnp.float32, jnp.bfloat16):
        # Cast in VMEM (free) instead of a separate HBM pass in the wrapper.
        x = x.astype(jnp.float32)

    # Linear layer on the MXU, f32 accumulation: (TB, 10).
    logits = jnp.dot(x, w_ref[...], preferred_element_type=jnp.float32)

    # Class-major layout (10, TB): the transpose goes to the XLU slot and is
    # cheap; every subsequent VPU/EUP op and the uint8 store become lane-dense
    # instead of operating on a 10-wide tile padded out to 128 lanes.
    lt = logits.T + b_ref[...]

    # softmax(logits - logit_t) > sigmoid(logit_t)
    #   <=> softmax(logits) > thresh                   (shift invariance)
    #   <=> exp(l - m)      > thresh * sum(exp(l - m)) (divide-free)
    m = jnp.max(lt, axis=0, keepdims=True)
    e = jnp.exp(lt - m)
    denom = jnp.sum(e, axis=0, keepdims=True)
    o_ref[...] = (e > thresh * denom).astype(jnp.uint8)


def digit_classifier_with_t(x, weight, bias, t, *, block_batch=None,
                            weight_transposed=False):
    """Forward pass of DigitClassifierWithT.

    Args:
      x:      [B, 784] or [B, 1, 28, 28]; f32 / bf16 preferred (other dtypes
              are cast inside the kernel after the VMEM load).
      weight: [10, 784] (PyTorch nn.Linear layout) or [784, 10] if
              weight_transposed=True (recommended for hot serving loops).
      bias:   [10]
      t:      Python float in (0, 1)
      block_batch: optional batch tile size override (rounded to 128 when the
              batch is tiled).

    Returns:
      uint8 mask of shape [B, 10]
    """
    B = x.shape[0]
    x2 = x.reshape(B, -1)                      # keep native dtype: no HBM cast
    in_dim = x2.shape[1]

    w_t = weight if weight_transposed else jnp.transpose(weight)   # (784, 10)
    if w_t.dtype not in (jnp.float32, jnp.bfloat16):
        w_t = w_t.astype(jnp.float32)
    out_dim = w_t.shape[1]
    b2 = bias.reshape(out_dim, 1).astype(jnp.float32)               # (10, 1)

    # Only the decision threshold is needed: the `- logit_t` shift in the
    # PyTorch forward is a softmax no-op (shift invariance).
    t32 = np.float32(t)
    logit_t = np.float32(np.log(t32 / (np.float32(1.0) - t32)))
    thresh = np.float32(1.0 / (1.0 + np.exp(-logit_t)))  # sigmoid(logit_t)
    scalars = jnp.array([thresh], dtype=jnp.float32)      # (1,) -> SMEM

    # ---- batch tile selection ------------------------------------------------
    if block_batch is None:
        tb = min(2048, B)
        # Keep both v7x TensorCores busy: split into >= 2 batch tiles when the
        # batch is large enough (neutral on single-TC v5e/v6e).
        if tb == B and B >= 256:
            tb = max(128, (pl.cdiv(B, 2) // 128) * 128)
    else:
        tb = min(block_batch, B)
    if tb < B:
        # A tiled batch axis must be a multiple of 128 so the (tb, 784) x
        # block and the lane-dense (10, tb) output block both satisfy the
        # (8, 128) tiling rule. Ragged last blocks are handled by Pallas.
        tb = max(128, (tb // 128) * 128)
        if tb >= B:
            tb = B
    grid_b = pl.cdiv(B, tb)

    cost = pl.CostEstimate(
        flops=2 * B * in_dim * out_dim,
        transcendentals=B * out_dim,
        bytes_accessed=(B * in_dim * x2.dtype.itemsize
                        + in_dim * out_dim * w_t.dtype.itemsize
                        + out_dim * 4
                        + B * out_dim),
    )

    out_t = pl.pallas_call(
        _classifier_kernel,
        out_shape=jax.ShapeDtypeStruct((out_dim, B), jnp.uint8),
        grid_spec=pltpu.PrefetchScalarGridSpec(
            num_scalar_prefetch=0,
            grid=(grid_b,),
            in_specs=[
                # Threshold scalar lives in SMEM (whole array, no tiling).
                pl.BlockSpec(memory_space=pltpu.MemorySpace.SMEM),
                # x streams through in batch tiles (double-buffered by Pallas).
                pl.BlockSpec((tb, in_dim), lambda i: (i, 0)),
                # Weight / bias stay VMEM-resident (constant block index).
                pl.BlockSpec((in_dim, out_dim), lambda i: (0, 0)),
                pl.BlockSpec((out_dim, 1), lambda i: (0, 0)),
            ],
            # Class-major output: lane-dense uint8 stores.
            out_specs=pl.BlockSpec((out_dim, tb), lambda i: (0, i)),
        ),
        compiler_params=pltpu.CompilerParams(
            dimension_semantics=("parallel",),
            vmem_limit_bytes=32 * 1024 * 1024,
        ),
        cost_estimate=cost,
    )(scalars, x2, w_t, b2)

    # Tiny (10*B bytes) transpose back to the PyTorch [B, 10] layout.
    return jnp.transpose(out_t)


def _reference(x, weight, bias, t):
    """Pure-JAX reference mirroring the PyTorch forward."""
    B = x.shape[0]
    x2 = x.reshape(B, -1).astype(jnp.float32)
    lt = np.float32(np.log(np.float32(t) / np.float32(1.0 - np.float32(t))))
    logits = x2 @ jnp.transpose(weight).astype(jnp.float32) + bias.astype(jnp.float32)
    probs = jax.nn.softmax(logits - lt, axis=1)
    th = np.float32(1.0 / (1.0 + np.exp(-lt)))
    return (probs > th).astype(jnp.uint8)


if __name__ == "__main__":
    key = jax.random.PRNGKey(0)
    kx, kw, kb, kx2 = jax.random.split(key, 4)

    t = 0.3

    # Deterministic synthetic nn.Linear(784, 10) parameters.
    weight = jax.random.normal(kw, (10, 784), dtype=jnp.float32) * 0.05
    bias = jax.random.normal(kb, (10,), dtype=jnp.float32) * 0.05

    # Case 1: small NCHW image batch [B, 1, 28, 28] (single-block path).
    B = 2
    x = jax.random.normal(kx, (B, 1, 28, 28), dtype=jnp.float32)
    out = jax.block_until_ready(digit_classifier_with_t(x, weight, bias, t))
    assert out.shape == (B, 10)
    assert out.dtype == jnp.uint8
    ref = _reference(x, weight, bias, t)
    np.testing.assert_array_equal(np.asarray(out), np.asarray(ref))

    # Case 2: multi-block grid with a ragged last tile (exercises the tiled
    # lane-dense (10, tb) output path and masked writeback of padded rows).
    B2 = 300
    x_big = jax.random.normal(kx2, (B2, 784), dtype=jnp.float32)
    out2 = jax.block_until_ready(
        digit_classifier_with_t(x_big, weight, bias, t, block_batch=128))
    assert out2.shape == (B2, 10)
    assert out2.dtype == jnp.uint8
    ref2 = _reference(x_big, weight, bias, t)
    np.testing.assert_array_equal(np.asarray(out2), np.asarray(ref2))

    print("KERNEL_OK")
</pallas_src>

<mosaic_0001>
module attributes {stable_mosaic.version = 11 : i64} {
  func.func @_classifier_kernel(%arg0: i32, %arg1: memref<1xf32, #tpu.memory_space<smem>>, %arg2: memref<2x784xf32, #tpu.memory_space<vmem>>, %arg3: memref<784x10xf32, #tpu.memory_space<vmem>>, %arg4: memref<10x1xf32, #tpu.memory_space<vmem>>, %arg5: memref<10x2xi8, #tpu.memory_space<vmem>>) attributes {dimension_semantics = [#tpu.dimension_semantics<parallel>], iteration_bounds = array<i64: 1>, scalar_prefetch = 0 : i64, scratch_operands = 0 : i64, tpu.core_type = #tpu.core_type<tc>, window_params = [{transform_indices = @transform_0, window_bounds = array<i64: 1>}, {transform_indices = @transform_1, window_bounds = array<i64: 2, 784>}, {pipeline_mode = #tpu.pipeline_mode<synchronous>, transform_indices = @transform_2, window_bounds = array<i64: 784, 10>}, {pipeline_mode = #tpu.pipeline_mode<synchronous>, transform_indices = @transform_3, window_bounds = array<i64: 10, 1>}, {transform_indices = @transform_4, window_bounds = array<i64: 10, 2>}]} {
    %c0 = arith.constant 0 : index
    %0 = memref.load %arg1[%c0] : memref<1xf32, #tpu.memory_space<smem>>
    %c0_0 = arith.constant 0 : index
    %c0_1 = arith.constant 0 : index
    %1 = vector.load %arg2[%c0_0, %c0_1] : memref<2x784xf32, #tpu.memory_space<vmem>>, vector<2x784xf32>
    %c0_2 = arith.constant 0 : index
    %c0_3 = arith.constant 0 : index
    %2 = vector.load %arg3[%c0_2, %c0_3] : memref<784x10xf32, #tpu.memory_space<vmem>>, vector<784x10xf32>
    %cst = arith.constant dense<0.000000e+00> : vector<2x10xf32>
    %3 = tpu.matmul %1, %2, %cst {dimension_numbers = #tpu.dot_dimension_numbers<[1], [0], [0], [1], [0, 0, 1, 1], [], []>} : vector<2x784xf32>, vector<784x10xf32>, vector<2x10xf32> -> vector<2x10xf32>
    %4 = tpu.transpose %3, [1, 0] : vector<2x10xf32> -> vector<10x2xf32>
    %c0_4 = arith.constant 0 : index
    %c0_5 = arith.constant 0 : index
    %5 = vector.load %arg4[%c0_4, %c0_5] : memref<10x1xf32, #tpu.memory_space<vmem>>, vector<10x1xf32>
    %6 = vector.broadcast %5 : vector<10x1xf32> to vector<10x2xf32>
    %7 = arith.addf %4, %6 : vector<10x2xf32>
    %cst_6 = arith.constant dense<0xFF800000> : vector<2xf32>
    %8 = vector.multi_reduction <maximumf>, %7, %cst_6 [0] : vector<10x2xf32> to vector<2xf32>
    %9 = vector.shape_cast %8 : vector<2xf32> to vector<1x2xf32>
    %10 = vector.broadcast %9 : vector<1x2xf32> to vector<10x2xf32>
    %11 = arith.subf %7, %10 : vector<10x2xf32>
    %12 = math.exp %11 : vector<10x2xf32>
    %cst_7 = arith.constant dense<0.000000e+00> : vector<2xf32>
    %13 = vector.multi_reduction <add>, %12, %cst_7 [0] : vector<10x2xf32> to vector<2xf32>
    %14 = vector.shape_cast %13 : vector<2xf32> to vector<1x2xf32>
    %15 = vector.broadcast %0 : f32 to vector<1x2xf32>
    %16 = arith.mulf %15, %14 : vector<1x2xf32>
    %17 = vector.broadcast %16 : vector<1x2xf32> to vector<10x2xf32>
    %18 = arith.cmpf ogt, %12, %17 : vector<10x2xf32>
    %19 = arith.extui %18 : vector<10x2xi1> to vector<10x2xi8>
    %c0_8 = arith.constant 0 : index
    %c0_9 = arith.constant 0 : index
    %20 = vector.load %arg5[%c0_8, %c0_9] : memref<10x2xi8, #tpu.memory_space<vmem>>, vector<10x2xi8>
    tpu.vector_store %arg5[%c0_8, %c0_9], %19 {strides = array<i32>} : memref<10x2xi8, #tpu.memory_space<vmem>>, vector<10x2xi8>,
    return
  }
  func.func @transform_0(%arg0: i32) -> i32 {
    %c0_i32 = arith.constant 0 : i32
    %c0_i32_0 = arith.constant 0 : i32
    return %c0_i32 : i32
  }
  func.func @transform_1(%arg0: i32) -> (i32, i32) {
    %c0_i32 = arith.constant 0 : i32
    %c0_i32_0 = arith.constant 0 : i32
    return %arg0, %c0_i32 : i32, i32
  }
  func.func @transform_2(%arg0: i32) -> (i32, i32) {
    %c0_i32 = arith.constant 0 : i32
    %c0_i32_0 = arith.constant 0 : i32
    %c0_i32_1 = arith.constant 0 : i32
    return %c0_i32, %c0_i32_0 : i32, i32
  }
  func.func @transform_3(%arg0: i32) -> (i32, i32) {
    %c0_i32 = arith.constant 0 : i32
    %c0_i32_0 = arith.constant 0 : i32
    %c0_i32_1 = arith.constant 0 : i32
    return %c0_i32, %c0_i32_0 : i32, i32
  }
  func.func @transform_4(%arg0: i32) -> (i32, i32) {
    %c0_i32 = arith.constant 0 : i32
    %c0_i32_0 = arith.constant 0 : i32
    return %c0_i32, %arg0 : i32, i32
  }
}

</mosaic_0001>

<llo_original>
// kernel: tpu_custom_call.1
$region0: #{tpu_custom_call.1}
  #allocation0 [shape = 'u32[]', space=smem, size = 0x4, offset = 0x4, fixed_abs, tag = 'smem constant byte address 0x4 - core index']
  #allocation1 [shape = 'u32[144,128]{1,0:T(1,128)}', space=vmem, size = 0x12000, scoped, tag = 'internal scratch']
  #allocation2 [shape = 'f32[1]{0:T(128)S(6)}', space=smem, size = 0x200, scoped, tag = 'scoped memory for tpu_custom_call.1']
  %s0 = inlined_call_operand.<no memory space> [shape: f32[1], index: 0, kind: input, shape index: {}]
  %s1 = inlined_call_operand.vmem [shape: f32[2,784], index: 1, kind: input, shape index: {}]
  %s2 = inlined_call_operand.vmem [shape: f32[784,10], index: 2, kind: input, shape index: {}]
  %s3 = inlined_call_operand.vmem [shape: f32[10,1], index: 3, kind: input, shape index: {}]
  %s4 = inlined_call_operand.vmem [shape: u8[10,2], index: 4, kind: output, shape index: {}]
  %s5 = sld [smem:[#allocation0]]
  $region26: #{tpu_custom_call.1} parent=0
    _
  %s7 = ssub.s32 1, %s5
  %s8 = scalar_select 0, %s7, %s5
  %9 = sst [smem:[#allocation2]] %s0
  // Predicated region
  $region2: #{tpu_custom_call.1} parent=0 // pred_check
    _
  $region3: #{tpu_custom_call.1} parent=0 // pred_check_branch
    %11 = sbr.rel (0) target = $region5
  $region4: #{tpu_custom_call.1} parent=0 // pred_region
    _
  $region5: #{tpu_custom_call.1} parent=0 // pred_fallthru
    _
  // Predicated region
  $region6: #{tpu_custom_call.1} parent=0 // pred_check
    _
  $region7: #{tpu_custom_call.1} parent=0 // pred_check_branch
    %13 = sbr.rel (0) target = $region9
  $region8: #{tpu_custom_call.1} parent=0 // pred_region
    _
  $region9: #{tpu_custom_call.1} parent=0 // pred_fallthru
    _
  // Predicated region
  $region10: #{tpu_custom_call.1} parent=0 // pred_check
    _
  $region11: #{tpu_custom_call.1} parent=0 // pred_check_branch
    %15 = sbr.rel (0) target = $region13
  $region12: #{tpu_custom_call.1} parent=0 // pred_region
    _
  $region13: #{tpu_custom_call.1} parent=0 // pred_fallthru
    _
  // Predicated region
  $region14: #{tpu_custom_call.1} parent=0 // pred_check
    _
  $region15: #{tpu_custom_call.1} parent=0 // pred_check_branch
    %17 = sbr.rel (0) target = $region17
  $region16: #{tpu_custom_call.1} parent=0 // pred_region
    _
  $region17: #{tpu_custom_call.1} parent=0 // pred_fallthru
    _
  %s20 = sld [smem:[#allocation2]]
  %v21 = vld [vmem:[%s1] sm:$0xff]
  %v22 = vld [vmem:[%s1 + $0x8] sm:$0x3f]
  %v23 = vld [vmem:[%s2] sm:$0xff]
  %v24 = vld [vmem:[%s2 + $0x8] sm:$0xff]
  %v25 = vld [vmem:[%s2 + $0x10] sm:$0xff]
  %v26 = vld [vmem:[%s2 + $0x18] sm:$0xff]
  %v27 = vld [vmem:[%s2 + $0x20] sm:$0xff]
  %v28 = vld [vmem:[%s2 + $0x28] sm:$0xff]
  %v29 = vld [vmem:[%s2 + $0x30] sm:$0xff]
  %v30 = vld [vmem:[%s2 + $0x38] sm:$0xff]
  %v31 = vld [vmem:[%s2 + $0x40] sm:$0xff]
  %v32 = vld [vmem:[%s2 + $0x48] sm:$0xff]
  %v33 = vld [vmem:[%s2 + $0x50] sm:$0xff]
  %v34 = vld [vmem:[%s2 + $0x58] sm:$0xff]
  %v35 = vld [vmem:[%s2 + $0x60] sm:$0xff]
  %v36 = vld [vmem:[%s2 + $0x68] sm:$0xff]
  %v37 = vld [vmem:[%s2 + $0x70] sm:$0xff]
  %v38 = vld [vmem:[%s2 + $0x78] sm:$0xff]
  %v39 = vld [vmem:[%s2 + $0x80] sm:$0xff]
  %v40 = vld [vmem:[%s2 + $0x88] sm:$0xff]
  %v41 = vld [vmem:[%s2 + $0x90] sm:$0xff]
  %v42 = vld [vmem:[%s2 + $0x98] sm:$0xff]
  %v43 = vld [vmem:[%s2 + $0xa0] sm:$0xff]
  %v44 = vld [vmem:[%s2 + $0xa8] sm:$0xff]
  %v45 = vld [vmem:[%s2 + $0xb0] sm:$0xff]
  %v46 = vld [vmem:[%s2 + $0xb8] sm:$0xff]
  %v47 = vld [vmem:[%s2 + $0xc0] sm:$0xff]
  %v48 = vld [vmem:[%s2 + $0xc8] sm:$0xff]
  %v49 = vld [vmem:[%s2 + $0xd0] sm:$0xff]
  %v50 = vld [vmem:[%s2 + $0xd8] sm:$0xff]
  %v51 = vld [vmem:[%s2 + $0xe0] sm:$0xff]
  %v52 = vld [vmem:[%s2 + $0xe8] sm:$0xff]
  %v53 = vld [vmem:[%s2 + $0xf0] sm:$0xff]
  %v54 = vld [vmem:[%s2 + $0xf8] sm:$0xff]
  %v55 = vld [vmem:[%s2 + $0x100] sm:$0xff]
  %v56 = vld [vmem:[%s2 + $0x108] sm:$0xff]
  %v57 = vld [vmem:[%s2 + $0x110] sm:$0xff]
  %v58 = vld [vmem:[%s2 + $0x118] sm:$0xff]
  %v59 = vld [vmem:[%s2 + $0x120] sm:$0xff]
  %v60 = vld [vmem:[%s2 + $0x128] sm:$0xff]
  %v61 = vld [vmem:[%s2 + $0x130] sm:$0xff]
  %v62 = vld [vmem:[%s2 + $0x138] sm:$0xff]
  %v63 = vld [vmem:[%s2 + $0x140] sm:$0xff]
  %v64 = vld [vmem:[%s2 + $0x148] sm:$0xff]
  %v65 = vld [vmem:[%s2 + $0x150] sm:$0xff]
  %v66 = vld [vmem:[%s2 + $0x158] sm:$0xff]
  %v67 = vld [vmem:[%s2 + $0x160] sm:$0xff]
  %v68 = vld [vmem:[%s2 + $0x168] sm:$0xff]
  %v69 = vld [vmem:[%s2 + $0x170] sm:$0xff]
  %v70 = vld [vmem:[%s2 + $0x178] sm:$0xff]
  %v71 = vld [vmem:[%s2 + $0x180] sm:$0xff]
  %v72 = vld [vmem:[%s2 + $0x188] sm:$0xff]
  %v73 = vld [vmem:[%s2 + $0x190] sm:$0xff]
  %v74 = vld [vmem:[%s2 + $0x198] sm:$0xff]
  %v75 = vld [vmem:[%s2 + $0x1a0] sm:$0xff]
  %v76 = vld [vmem:[%s2 + $0x1a8] sm:$0xff]
  %v77 = vld [vmem:[%s2 + $0x1b0] sm:$0xff]
  %v78 = vld [vmem:[%s2 + $0x1b8] sm:$0xff]
  %v79 = vld [vmem:[%s2 + $0x1c0] sm:$0xff]
  %v80 = vld [vmem:[%s2 + $0x1c8] sm:$0xff]
  %v81 = vld [vmem:[%s2 + $0x1d0] sm:$0xff]
  %v82 = vld [vmem:[%s2 + $0x1d8] sm:$0xff]
  %v83 = vld [vmem:[%s2 + $0x1e0] sm:$0xff]
  %v84 = vld [vmem:[%s2 + $0x1e8] sm:$0xff]
  %v85 = vld [vmem:[%s2 + $0x1f0] sm:$0xff]
  %v86 = vld [vmem:[%s2 + $0x1f8] sm:$0xff]
  %v87 = vld [vmem:[%s2 + $0x200] sm:$0xff]
  %v88 = vld [vmem:[%s2 + $0x208] sm:$0xff]
  %v89 = vld [vmem:[%s2 + $0x210] sm:$0xff]
  %v90 = vld [vmem:[%s2 + $0x218] sm:$0xff]
  %v91 = vld [vmem:[%s2 + $0x220] sm:$0xff]
  %v92 = vld [vmem:[%s2 + $0x228] sm:$0xff]
  %v93 = vld [vmem:[%s2 + $0x230] sm:$0xff]
  %v94 = vld [vmem:[%s2 + $0x238] sm:$0xff]
  %v95 = vld [vmem:[%s2 + $0x240] sm:$0xff]
  %v96 = vld [vmem:[%s2 + $0x248] sm:$0xff]
  %v97 = vld [vmem:[%s2 + $0x250] sm:$0xff]
  %v98 = vld [vmem:[%s2 + $0x258] sm:$0xff]
  %v99 = vld [vmem:[%s2 + $0x260] sm:$0xff]
  %v100 = vld [vmem:[%s2 + $0x268] sm:$0xff]
  %v101 = vld [vmem:[%s2 + $0x270] sm:$0xff]
  %v102 = vld [vmem:[%s2 + $0x278] sm:$0xff]
  %v103 = vld [vmem:[%s2 + $0x280] sm:$0xff]
  %v104 = vld [vmem:[%s2 + $0x288] sm:$0xff]
  %v105 = vld [vmem:[%s2 + $0x290] sm:$0xff]
  %v106 = vld [vmem:[%s2 + $0x298] sm:$0xff]
  %v107 = vld [vmem:[%s2 + $0x2a0] sm:$0xff]
  %v108 = vld [vmem:[%s2 + $0x2a8] sm:$0xff]
  %v109 = vld [vmem:[%s2 + $0x2b0] sm:$0xff]
  %v110 = vld [vmem:[%s2 + $0x2b8] sm:$0xff]
  %v111 = vld [vmem:[%s2 + $0x2c0] sm:$0xff]
  %v112 = vld [vmem:[%s2 + $0x2c8] sm:$0xff]
  %v113 = vld [vmem:[%s2 + $0x2d0] sm:$0xff]
  %v114 = vld [vmem:[%s2 + $0x2d8] sm:$0xff]
  %v115 = vld [vmem:[%s2 + $0x2e0] sm:$0xff]
  %v116 = vld [vmem:[%s2 + $0x2e8] sm:$0xff]
  %v117 = vld [vmem:[%s2 + $0x2f0] sm:$0xff]
  %v118 = vld [vmem:[%s2 + $0x2f8] sm:$0xff]
  %v119 = vld [vmem:[%s2 + $0x300] sm:$0xff]
  %v120 = vld [vmem:[%s2 + $0x308] sm:$0xff]
  %v123 = vcombine.high %v21, %v21
  %v125 = vunpack.c.l.s4 1983009808
  %v126 = vunpack.c.0.s8 %v125
  %v127 = vlaneseq
  %v128 = vshrl.u32 %v127, 7
  %v129 = vsub.s32 %v126, %v128
  %v130 = vrot.slane %v21, %v129
  %v132 = vunpack.c.l.s4 1983009808
  %v133 = vunpack.c.0.s8 %v132
  %v134 = vlaneseq
  %v135 = vshrl.u32 %v134, 7
  %v136 = vsub.s32 %v133, %v135
  %v137 = vrot.slane %v123, %v136
  %v138 = vcombine.high %v130, %v130
  %v139 = vcombine.high %v137, %v137
  %v140 = vcombine.high %v22, %v22
  %v142 = vunpack.c.l.s4 1983009808
  %v143 = vunpack.c.0.s8 %v142
  %v144 = vlaneseq
  %v145 = vshrl.u32 %v144, 7
  %v146 = vsub.s32 %v143, %v145
  %v147 = vrot.slane %v22, %v146
  %v149 = vunpack.c.l.s4 1983009808
  %v150 = vunpack.c.0.s8 %v149
  %v151 = vlaneseq
  %v152 = vshrl.u32 %v151, 7
  %v153 = vsub.s32 %v150, %v152
  %v154 = vrot.slane %v140, %v153
  %v155 = vcombine.high %v147, %v147
  %vm162 = vcmask 130048
  %v163 = vsel %vm162, %v154, 0
  %165 = vmatprep.subr.mxu0 0.0
  %166 = vmatpush1.msra.mxu0 %v23
  %167 = vmatprep.subr.mxu0 0.0
  %168 = vmatpush1.msra.mxu0 %v24
  %169 = vmatprep.subr.mxu0 0.0
  %170 = vmatpush1.msra.mxu0 %v25
  %171 = vmatprep.subr.mxu0 0.0
  %172 = vmatpush1.msra.mxu0 %v26
  %173 = vmatprep.subr.mxu0 0.0
  %174 = vmatpush1.msra.mxu0 %v27
  %175 = vmatprep.subr.mxu0 0.0
  %176 = vmatpush1.msra.mxu0 %v28
  %177 = vmatprep.subr.mxu0 0.0
  %178 = vmatpush1.msra.mxu0 %v29
  %179 = vmatprep.subr.mxu0 0.0
  %180 = vmatpush1.msra.mxu0 %v30
  %181 = vmatprep.subr.mxu0 0.0
  %182 = vmatpush1.msra.mxu0 %v31
  %183 = vmatprep.subr.mxu0 0.0
  %184 = vmatpush1.msra.mxu0 %v32
  %185 = vmatprep.subr.mxu0 0.0
  %186 = vmatpush1.msra.mxu0 %v33
  %187 = vmatprep.subr.mxu0 0.0
  %188 = vmatpush1.msra.mxu0 %v34
  %189 = vmatprep.subr.mxu0 0.0
  %190 = vmatpush1.msra.mxu0 %v35
  %191 = vmatprep.subr.mxu0 0.0
  %192 = vmatpush1.msra.mxu0 %v36
  %193 = vmatprep.subr.mxu0 0.0
  %194 = vmatpush1.msra.mxu0 %v37
  %195 = vmatprep.subr.mxu0 0.0
  %196 = vmatpush1.msra.mxu0 %v38
  %197 = vmatprep.subr.mxu0 0.0
  %198 = vmatpush1.msra.mxu0 %v39
  %199 = vmatprep.subr.mxu0 0.0
  %200 = vmatpush1.msra.mxu0 %v40
  %201 = vmatprep.subr.mxu0 0.0
  %202 = vmatpush1.msra.mxu0 %v41
  %203 = vmatprep.subr.mxu0 0.0
  %204 = vmatpush1.msra.mxu0 %v42
  %205 = vmatprep.subr.mxu0 0.0
  %206 = vmatpush1.msra.mxu0 %v43
  %207 = vmatprep.subr.mxu0 0.0
  %208 = vmatpush1.msra.mxu0 %v44
  %209 = vmatprep.subr.mxu0 0.0
  %210 = vmatpush1.msra.mxu0 %v45
  %211 = vmatprep.subr.mxu0 0.0
  %212 = vmatpush1.msra.mxu0 %v46
  %213 = vmatprep.subr.mxu0 0.0
  %214 = vmatpush1.msra.mxu0 %v47
  %215 = vmatprep.subr.mxu0 0.0
  %216 = vmatpush1.msra.mxu0 %v48
  %217 = vmatprep.subr.mxu0 0.0
  %218 = vmatpush1.msra.mxu0 %v49
  %219 = vmatprep.subr.mxu0 0.0
  %220 = vmatpush1.msra.mxu0 %v50
  %221 = vmatprep.subr.mxu0 0.0
  %222 = vmatpush1.msra.mxu0 %v51
  %223 = vmatprep.subr.mxu0 0.0
  %224 = vmatpush1.msra.mxu0 %v52
  %225 = vmatprep.subr.mxu0 0.0
  %226 = vmatpush1.msra.mxu0 %v53
  %227 = vmatprep.subr.mxu0 0.0
  %228 = vmatpush1.msra.mxu0 %v54
  %229 = vmatprep.mubr.f32.mxu0 %v138
  %230 = vmatmul.mubr.f32.gmra.mrb[0].mxu0 %v130
  %v231 = vpop.f32.mrb[0].mxu0
  %v232 = vadd.f32 0.0, %v231
  %v233 = vpop.f32.mrb[0].mxu0
  %234 = vdwg.mxu0
  %235 = vmatprep.subr.mxu0 0.0
  %236 = vmatpush1.msra.mxu0 %v55
  %237 = vmatprep.subr.mxu0 0.0
  %238 = vmatpush1.msra.mxu0 %v56
  %239 = vmatprep.subr.mxu0 0.0
  %240 = vmatpush1.msra.mxu0 %v57
  %241 = vmatprep.subr.mxu0 0.0
  %242 = vmatpush1.msra.mxu0 %v58
  %243 = vmatprep.subr.mxu0 0.0
  %244 = vmatpush1.msra.mxu0 %v59
  %245 = vmatprep.subr.mxu0 0.0
  %246 = vmatpush1.msra.mxu0 %v60
  %247 = vmatprep.subr.mxu0 0.0
  %248 = vmatpush1.msra.mxu0 %v61
  %249 = vmatprep.subr.mxu0 0.0
  %250 = vmatpush1.msra.mxu0 %v62
  %251 = vmatprep.subr.mxu0 0.0
  %252 = vmatpush1.msra.mxu0 %v63
  %253 = vmatprep.subr.mxu0 0.0
  %254 = vmatpush1.msra.mxu0 %v64
  %255 = vmatprep.subr.mxu0 0.0
  %256 = vmatpush1.msra.mxu0 %v65
  %257 = vmatprep.subr.mxu0 0.0
  %258 = vmatpush1.msra.mxu0 %v66
  %259 = vmatprep.subr.mxu0 0.0
  %260 = vmatpush1.msra.mxu0 %v67
  %261 = vmatprep.subr.mxu0 0.0
  %262 = vmatpush1.msra.mxu0 %v68
  %263 = vmatprep.subr.mxu0 0.0
  %264 = vmatpush1.msra.mxu0 %v69
  %265 = vmatprep.subr.mxu0 0.0
  %266 = vmatpush1.msra.mxu0 %v70
  %267 = vmatprep.subr.mxu0 0.0
  %268 = vmatpush1.msra.mxu0 %v71
  %269 = vmatprep.subr.mxu0 0.0
  %270 = vmatpush1.msra.mxu0 %v72
  %271 = vmatprep.subr.mxu0 0.0
  %272 = vmatpush1.msra.mxu0 %v73
  %273 = vmatprep.subr.mxu0 0.0
  %274 = vmatpush1.msra.mxu0 %v74
  %275 = vmatprep.subr.mxu0 0.0
  %276 = vmatpush1.msra.mxu0 %v75
  %277 = vmatprep.subr.mxu0 0.0
  %278 = vmatpush1.msra.mxu0 %v76
  %279 = vmatprep.subr.mxu0 0.0
  %280 = vmatpush1.msra.mxu0 %v77
  %281 = vmatprep.subr.mxu0 0.0
  %282 = vmatpush1.msra.mxu0 %v78
  %283 = vmatprep.subr.mxu0 0.0
  %284 = vmatpush1.msra.mxu0 %v79
  %285 = vmatprep.subr.mxu0 0.0
  %286 = vmatpush1.msra.mxu0 %v80
  %287 = vmatprep.subr.mxu0 0.0
  %288 = vmatpush1.msra.mxu0 %v81
  %289 = vmatprep.subr.mxu0 0.0
  %290 = vmatpush1.msra.mxu0 %v82
  %291 = vmatprep.subr.mxu0 0.0
  %292 = vmatpush1.msra.mxu0 %v83
  %293 = vmatprep.subr.mxu0 0.0
  %294 = vmatpush1.msra.mxu0 %v84
  %295 = vmatprep.subr.mxu0 0.0
  %296 = vmatpush1.msra.mxu0 %v85
  %297 = vmatprep.subr.mxu0 0.0
  %298 = vmatpush1.msra.mxu0 %v86
  %299 = vmatprep.mubr.f32.mxu0 %v139
  %300 = vmatmul.mubr.f32.gmra.mrb[0].mxu0 %v137
  %v301 = vpop.f32.mrb[0].mxu0
  %v302 = vadd.f32 %v232, %v301
  %v303 = vpop.f32.mrb[0].mxu0
  %304 = vdwg.mxu0
  %305 = vmatprep.subr.mxu0 0.0
  %306 = vmatpush1.msra.mxu0 %v87
  %307 = vmatprep.subr.mxu0 0.0
  %308 = vmatpush1.msra.mxu0 %v88
  %309 = vmatprep.subr.mxu0 0.0
  %310 = vmatpush1.msra.mxu0 %v89
  %311 = vmatprep.subr.mxu0 0.0
  %312 = vmatpush1.msra.mxu0 %v90
  %313 = vmatprep.subr.mxu0 0.0
  %314 = vmatpush1.msra.mxu0 %v91
  %315 = vmatprep.subr.mxu0 0.0
  %316 = vmatpush1.msra.mxu0 %v92
  %317 = vmatprep.subr.mxu0 0.0
  %318 = vmatpush1.msra.mxu0 %v93
  %319 = vmatprep.subr.mxu0 0.0
  %320 = vmatpush1.msra.mxu0 %v94
  %321 = vmatprep.subr.mxu0 0.0
  %322 = vmatpush1.msra.mxu0 %v95
  %323 = vmatprep.subr.mxu0 0.0
  %324 = vmatpush1.msra.mxu0 %v96
  %325 = vmatprep.subr.mxu0 0.0
  %326 = vmatpush1.msra.mxu0 %v97
  %327 = vmatprep.subr.mxu0 0.0
  %328 = vmatpush1.msra.mxu0 %v98
  %329 = vmatprep.subr.mxu0 0.0
  %330 = vmatpush1.msra.mxu0 %v99
  %331 = vmatprep.subr.mxu0 0.0
  %332 = vmatpush1.msra.mxu0 %v100
  %333 = vmatprep.subr.mxu0 0.0
  %334 = vmatpush1.msra.mxu0 %v101
  %335 = vmatprep.subr.mxu0 0.0
  %336 = vmatpush1.msra.mxu0 %v102
  %337 = vmatprep.subr.mxu0 0.0
  %338 = vmatpush1.msra.mxu0 %v103
  %339 = vmatprep.subr.mxu0 0.0
  %340 = vmatpush1.msra.mxu0 %v104
  %341 = vmatprep.subr.mxu0 0.0
  %342 = vmatpush1.msra.mxu0 %v105
  %343 = vmatprep.subr.mxu0 0.0
  %344 = vmatpush1.msra.mxu0 %v106
  %345 = vmatprep.subr.mxu0 0.0
  %346 = vmatpush1.msra.mxu0 %v107
  %347 = vmatprep.subr.mxu0 0.0
  %348 = vmatpush1.msra.mxu0 %v108
  %349 = vmatprep.subr.mxu0 0.0
  %350 = vmatpush1.msra.mxu0 %v109
  %351 = vmatprep.subr.mxu0 0.0
  %352 = vmatpush1.msra.mxu0 %v110
  %353 = vmatprep.subr.mxu0 0.0
  %354 = vmatpush1.msra.mxu0 %v111
  %355 = vmatprep.subr.mxu0 0.0
  %356 = vmatpush1.msra.mxu0 %v112
  %357 = vmatprep.subr.mxu0 0.0
  %358 = vmatpush1.msra.mxu0 %v113
  %359 = vmatprep.subr.mxu0 0.0
  %360 = vmatpush1.msra.mxu0 %v114
  %361 = vmatprep.subr.mxu0 0.0
  %362 = vmatpush1.msra.mxu0 %v115
  %363 = vmatprep.subr.mxu0 0.0
  %364 = vmatpush1.msra.mxu0 %v116
  %365 = vmatprep.subr.mxu0 0.0
  %366 = vmatpush1.msra.mxu0 %v117
  %367 = vmatprep.subr.mxu0 0.0
  %368 = vmatpush1.msra.mxu0 %v118
  %369 = vmatprep.mubr.f32.mxu0 %v155
  %370 = vmatmul.mubr.f32.gmra.mrb[0].mxu0 %v147
  %v371 = vpop.f32.mrb[0].mxu0
  %v372 = vadd.f32 %v302, %v371
  %v373 = vpop.f32.mrb[0].mxu0
  %374 = vdwg.mxu0
  %375 = vmatprep.subr.mxu0 0.0
  %376 = vmatpush1.msra.mxu0 %v119
  %377 = vmatprep.subr.mxu0 0.0
  %378 = vmatpush1.msra.mxu0 %v120
  %379 = vmatprep.subr.mxu0 0.0
  %380 = vmatpush1.msra.mxu0 0.0
  %381 = vmatprep.subr.mxu0 0.0
  %382 = vmatpush1.msra.mxu0 0.0
  %383 = vmatprep.subr.mxu0 0.0
  %384 = vmatpush1.msra.mxu0 0.0
  %385 = vmatprep.subr.mxu0 0.0
  %386 = vmatpush1.msra.mxu0 0.0
  %387 = vmatprep.subr.mxu0 0.0
  %388 = vmatpush1.msra.mxu0 0.0
  %389 = vmatprep.subr.mxu0 0.0
  %390 = vmatpush1.msra.mxu0 0.0
  %391 = vmatprep.subr.mxu0 0.0
  %392 = vmatpush1.msra.mxu0 0.0
  %393 = vmatprep.subr.mxu0 0.0
  %394 = vmatpush1.msra.mxu0 0.0
  %395 = vmatprep.subr.mxu0 0.0
  %396 = vmatpush1.msra.mxu0 0.0
  %397 = vmatprep.subr.mxu0 0.0
  %398 = vmatpush1.msra.mxu0 0.0
  %399 = vmatprep.subr.mxu0 0.0
  %400 = vmatpush1.msra.mxu0 0.0
  %401 = vmatprep.subr.mxu0 0.0
  %402 = vmatpush1.msra.mxu0 0.0
  %403 = vmatprep.subr.mxu0 0.0
  %404 = vmatpush1.msra.mxu0 0.0
  %405 = vmatprep.subr.mxu0 0.0
  %406 = vmatpush1.msra.mxu0 0.0
  %407 = vmatprep.subr.mxu0 0.0
  %408 = vmatpush1.msra.mxu0 0.0
  %409 = vmatprep.subr.mxu0 0.0
  %410 = vmatpush1.msra.mxu0 0.0
  %411 = vmatprep.subr.mxu0 0.0
  %412 = vmatpush1.msra.mxu0 0.0
  %413 = vmatprep.subr.mxu0 0.0
  %414 = vmatpush1.msra.mxu0 0.0
  %415 = vmatprep.subr.mxu0 0.0
  %416 = vmatpush1.msra.mxu0 0.0
  %417 = vmatprep.subr.mxu0 0.0
  %418 = vmatpush1.msra.mxu0 0.0
  %419 = vmatprep.subr.mxu0 0.0
  %420 = vmatpush1.msra.mxu0 0.0
  %421 = vmatprep.subr.mxu0 0.0
  %422 = vmatpush1.msra.mxu0 0.0
  %423 = vmatprep.subr.mxu0 0.0
  %424 = vmatpush1.msra.mxu0 0.0
  %425 = vmatprep.subr.mxu0 0.0
  %426 = vmatpush1.msra.mxu0 0.0
  %427 = vmatprep.subr.mxu0 0.0
  %428 = vmatpush1.msra.mxu0 0.0
  %429 = vmatprep.subr.mxu0 0.0
  %430 = vmatpush1.msra.mxu0 0.0
  %431 = vmatprep.subr.mxu0 0.0
  %432 = vmatpush1.msra.mxu0 0.0
  %433 = vmatprep.subr.mxu0 0.0
  %434 = vmatpush1.msra.mxu0 0.0
  %435 = vmatprep.subr.mxu0 0.0
  %436 = vmatpush1.msra.mxu0 0.0
  %437 = vmatprep.subr.mxu0 0.0
  %438 = vmatpush1.msra.mxu0 0.0
  %439 = vmatprep.mubr.f32.mxu0 0.0
  %440 = vmatmul.mubr.f32.gmra.mrb[0].mxu0 %v163
  %v441 = vpop.f32.mrb[0].mxu0
  %v442 = vadd.f32 %v372, %v441
  %v443 = vpop.f32.mrb[0].mxu0
  %444 = vdwg.mxu0
  %445 = vxpose.xlu0.b32.start [1/16] %v442, 128
  %446 = vxpose.xlu0.b32.cont [2/16] 0.0, 128
  %447 = vxpose.xlu0.b32.cont [3/16] 0.0, 128
  %448 = vxpose.xlu0.b32.cont [4/16] 0.0, 128
  %449 = vxpose.xlu0.b32.cont [5/16] 0.0, 128
  %450 = vxpose.xlu0.b32.cont [6/16] 0.0, 128
  %451 = vxpose.xlu0.b32.cont [7/16] 0.0, 128
  %452 = vxpose.xlu0.b32.cont [8/16] 0.0, 128
  %453 = vxpose.xlu0.b32.cont [9/16] 0.0, 128
  %454 = vxpose.xlu0.b32.cont [10/16] 0.0, 128
  %455 = vxpose.xlu0.b32.cont [11/16] 0.0, 128
  %456 = vxpose.xlu0.b32.cont [12/16] 0.0, 128
  %457 = vxpose.xlu0.b32.cont [13/16] 0.0, 128
  %458 = vxpose.xlu0.b32.cont [14/16] 0.0, 128
  %459 = vxpose.xlu0.b32.cont [15/16] 0.0, 128
  %460 = vxpose.xlu0.b32.end [16/16] 0.0, 128
  %v461 = vpop.trf.xlu0
  %v462 = vpop.trf.xlu0
  %v463 = vpop.trf.xlu0
  %v464 = vpop.trf.xlu0
  %v465 = vpop.trf.xlu0
  %v466 = vpop.trf.xlu0
  %v467 = vpop.trf.xlu0
  %v468 = vpop.trf.xlu0
  %v469 = vpop.trf.xlu0
  %v470 = vpop.trf.xlu0
  %v471 = vpop.trf.xlu0
  %v472 = vpop.trf.xlu0
  %v473 = vpop.trf.xlu0
  %v474 = vpop.trf.xlu0
  %v475 = vpop.trf.xlu0
  %v476 = vpop.trf.xlu0
  %v477 = vld [vmem:[%s3] sm:$0xff]
  %v478 = vld [vmem:[%s3 + $0x8] sm:$0x3]
  %480 = vset.pattern.permute.xlu0 0
  %481 = vperm.xlu0 %480, %v477
  %v482 = vpop.permute.xlu0 %481
  %485 = vset.pattern.permute.xlu0 0
  %486 = vperm.xlu0 %485, %v478
  %v487 = vpop.permute.xlu0 %486
  %v489 = vadd.f32 %v461, %v482
  %v490 = vadd.f32 %v462, %v487
  %vm491 = vcmask 15360
  %v492 = vsel %vm491, %v489, -inf
  %vm493 = vcmask 9216
  %v494 = vsel %vm493, %v490, -inf
  %v495 = vmax.f32 %v492, %v494
  %v496 = vrot.slane %v495, 4
  %v497 = vmax.f32 %v495, %v496
  %v498 = vrot.slane %v497, 2
  %v499 = vmax.f32 %v497, %v498
  %v500 = vrot.slane %v499, 1
  %v501 = vmax.f32 %v499, %v500
  %v502 = vsub.f32 %v489, %v501
  %v503 = vsub.f32 %v490, %v501
  %v504 = vmul.f32 %v502, 1.442695
  %v505 = vpow.pop %v504
  %v506 = vmul.f32 %v503, 1.442695
  %v507 = vpow.pop %v506
  %v508 = vsel %vm491, %v505, 0.0
  %v509 = vsel %vm493, %v507, 0.0
  %v510 = vadd.f32 %v508, %v509
  %v511 = vrot.slane %v510, 4
  %v512 = vadd.f32 %v510, %v511
  %v513 = vrot.slane %v512, 2
  %v514 = vadd.f32 %v512, %v513
  %v515 = vrot.slane %v514, 1
  %v516 = vadd.f32 %v514, %v515
  %v517 = vstv %s20
  %v518 = vmul.f32 %v517, %v516
  %vm519 = vcmp.gt.f32.partialorder %v505, %v518
  %vm520 = vcmp.gt.f32.partialorder %v507, %v518
  %vm521 = vmpackc.low %vm520, %vm519
  %vm522 = vmpackc.even %vm521, %vm521
  %v523 = vsel %vm522, 16843009, 0
  %v524 = vunpack.c.0.s8 %v523
  %v525 = vunpack.c.1.s8 %v523
  %v526 = vpack.c.b16 %v524, %v524
  %v527 = vpack.c.b8 %v526, %v526
  %v528 = vpack.c.b16 %v525, %v525
  %v529 = vpack.c.b8 %v528, %v528
  %530 = vst.msk [vmem:[%s4] sm:$0x3] %vm493, %v527
  %vm531 = vcmask 8192
  %vm532 = vsmask.f32 256
  %vm533 = vmand %vm531, %vm532
  %v534 = vld [vmem:[%s4 + $0x2] sm:$0x1]
  %v535 = vsel %vm533, %v529, %v534
  %536 = vst [vmem:[%s4 + $0x2] sm:$0x1] %v535
  // Predicated region
  $region18: #{tpu_custom_call.1} parent=0 // pred_check
    _
  $region19: #{tpu_custom_call.1} parent=0 // pred_check_branch
    %538 = sbr.rel (0) target = $region21
  $region20: #{tpu_custom_call.1} parent=0 // pred_region
    _
  $region21: #{tpu_custom_call.1} parent=0 // pred_fallthru
    _
  // Predicated region
  $region22: #{tpu_custom_call.1} parent=0 // pred_check
    _
  $region23: #{tpu_custom_call.1} parent=0 // pred_check_branch
    %540 = sbr.rel (0) target = $region25
  $region24: #{tpu_custom_call.1} parent=0 // pred_region
    _
  $region25: #{tpu_custom_call.1} parent=0 // pred_fallthru
    _

</llo_original>
